<compile_context>
chip_gen: v5e
topology: v5e:2x2
jax: 0.10.0
libtpu: 0.0.40
codegen_flags: <defaults>
</compile_context>

<pallas_src>
import functools

import jax
import jax.numpy as jnp
from jax.experimental import pallas as pl
from jax.experimental.pallas import tpu as pltpu


def encoder_layer_kernel(x_ref, wqkv_ref, bqkv_ref, wo_ref, bo_ref,
                         w1_ref, b1_ref, w2_ref, b2_ref, o_ref, *, num_heads):
    x = x_ref[...]                                   # (S, D)
    H = num_heads
    hd = wo_ref.shape[0]                             # H * dk
    dk = hd // H
    scale = 1.0 / (float(dk) ** 0.5)                 # softmax(QK^T / sqrt(dim_q))

    # --- fused Q/K/V projection for all heads: one wide MXU pass ---
    qkv = jnp.dot(x, wqkv_ref[...], preferred_element_type=jnp.float32) + bqkv_ref[...]  # (S, 3*H*dk)
    q_all = qkv[:, :hd]
    k_all = qkv[:, hd:2 * hd]
    v_all = qkv[:, 2 * hd:]

    # --- per-head scores + softmax (small S x S work), heads gathered for one output matmul ---
    heads = []
    for h in range(H):
        q = q_all[:, h * dk:(h + 1) * dk]
        k = k_all[:, h * dk:(h + 1) * dk]
        v = v_all[:, h * dk:(h + 1) * dk]
        s = jnp.dot(q, k.T, preferred_element_type=jnp.float32) * scale    # (S, S)
        s = s - jnp.max(s, axis=-1, keepdims=True)
        p = jnp.exp(s)
        denom = jnp.sum(p, axis=-1, keepdims=True)
        p = p * pl.reciprocal(denom, approx=True)                          # EUP, frees VALU slots
        heads.append(jnp.dot(p, v, preferred_element_type=jnp.float32))    # (S, dk)
    heads_cat = jnp.concatenate(heads, axis=-1)                            # (S, H*dk)

    # --- single fused output projection: concat(heads) @ Wo + bo ---
    attn = jnp.dot(heads_cat, wo_ref[...], preferred_element_type=jnp.float32) + bo_ref[...]

    x1 = x + attn                      # residual #1 (dropout = identity; LayerNorm unused by spec)

    # --- feed forward ---
    hidden = jnp.dot(x1, w1_ref[...], preferred_element_type=jnp.float32) + b1_ref[...]
    hidden = jnp.maximum(hidden, 0.0)
    ff = jnp.dot(hidden, w2_ref[...], preferred_element_type=jnp.float32) + b2_ref[...]

    o_ref[...] = (x1 + ff).astype(o_ref.dtype)       # residual #2, stored as a flat (S, D) slab


def transformer_encoder_layer(x, params, *, num_heads):
    B, S, D = x.shape
    wq, bq, wk, bk, wv, bv, wo, bo, w1, b1, w2, b2 = params
    H = num_heads

    # Fuse per-head projection weights in the wrapper (one-time layout plumbing, not compute).
    def fuse_w(w):   # (H, D, d) -> (D, H*d), head h occupies columns [h*d:(h+1)*d]
        return jnp.transpose(w, (1, 0, 2)).reshape(D, H * w.shape[-1])

    def fuse_b(b):   # (H, 1, d) -> (1, H*d)
        return jnp.transpose(b, (1, 0, 2)).reshape(1, H * b.shape[-1])

    wqkv = jnp.concatenate([fuse_w(wq), fuse_w(wk), fuse_w(wv)], axis=-1)   # (D, 3*H*dk)
    bqkv = jnp.concatenate([fuse_b(bq), fuse_b(bk), fuse_b(bv)], axis=-1)   # (1, 3*H*dk)

    x_flat = x.reshape(B * S, D)       # lane-contiguous activation slab

    def full(a):
        nd = a.ndim
        return pl.BlockSpec(a.shape, lambda b, _n=nd: (0,) * _n)

    out_flat = pl.pallas_call(
        functools.partial(encoder_layer_kernel, num_heads=H),
        out_shape=jax.ShapeDtypeStruct((B * S, D), x.dtype),
        grid=(B,),                     # one batch (== one S-row chunk) per step; parallel across TCs
        in_specs=[
            pl.BlockSpec((S, D), lambda b: (b, 0)),
            full(wqkv), full(bqkv),
            full(wo), full(bo),
            full(w1), full(b1),
            full(w2), full(b2),
        ],
        out_specs=pl.BlockSpec((S, D), lambda b: (b, 0)),
        compiler_params=pltpu.CompilerParams(dimension_semantics=("parallel",)),
    )(x_flat, wqkv, bqkv, wo, bo, w1, b1, w2, b2)
    return out_flat.reshape(B, S, D)


def reference_jax(x, params):
    wq, bq, wk, bk, wv, bv, wo, bo, w1, b1, w2, b2 = params
    H, _, dk = wk.shape
    heads = []
    for h in range(H):
        q = x @ wq[h] + bq[h]
        k = x @ wk[h] + bk[h]
        v = x @ wv[h] + bv[h]
        s = jnp.einsum("bqd,bkd->bqk", q, k) / (q.shape[-1] ** 0.5)
        p = jax.nn.softmax(s, axis=-1)
        heads.append(jnp.einsum("bqk,bkd->bqd", p, v))
    attn = jnp.concatenate(heads, axis=-1) @ wo + bo
    x1 = x + attn
    ff = jnp.maximum(x1 @ w1 + b1, 0.0) @ w2 + b2
    return x1 + ff


if __name__ == "__main__":
    # Small shapes consistent with the module (scaled-down defaults).
    B, S, D = 2, 8, 32          # batch, seq, dim_model
    H = 4                       # num_heads
    dq = dk = max(D // H, 1)    # 8
    F = 64                      # dim_feedforward

    key = jax.random.PRNGKey(0)
    ks = jax.random.split(key, 14)
    f32 = jnp.float32
    x = jax.random.normal(ks[0], (B, S, D), f32)

    # Deterministic synthetic parameters (biases kept 2-D for TPU-friendly broadcasting).
    wq = 0.1 * jax.random.normal(ks[1], (H, D, dq), f32)
    bq = 0.1 * jax.random.normal(ks[2], (H, 1, dq), f32)
    wk = 0.1 * jax.random.normal(ks[3], (H, D, dk), f32)
    bk = 0.1 * jax.random.normal(ks[4], (H, 1, dk), f32)
    wv = 0.1 * jax.random.normal(ks[5], (H, D, dk), f32)
    bv = 0.1 * jax.random.normal(ks[6], (H, 1, dk), f32)
    wo = 0.1 * jax.random.normal(ks[7], (H * dk, D), f32)
    bo = 0.1 * jax.random.normal(ks[8], (1, D), f32)
    w1 = 0.1 * jax.random.normal(ks[9], (D, F), f32)
    b1 = 0.1 * jax.random.normal(ks[10], (1, F), f32)
    w2 = 0.1 * jax.random.normal(ks[11], (F, D), f32)
    b2 = 0.1 * jax.random.normal(ks[12], (1, D), f32)
    params = (wq, bq, wk, bk, wv, bv, wo, bo, w1, b1, w2, b2)

    out = transformer_encoder_layer(x, params, num_heads=H)
    out = jax.block_until_ready(out)

    ref = reference_jax(x, params)
    assert out.shape == (B, S, D)
    # Tolerance loosened vs exact-math reference because the softmax normalization uses the EUP's
    # approximate reciprocal; everything else is exact f32, so real bugs would exceed this by far.
    assert jnp.allclose(out, ref, atol=1e-2, rtol=1e-2), "mismatch vs JAX reference"

    # TODO(synk): dropout is identity (eval mode); the module's LayerNorm is constructed but unused
    # in Residual.forward, so it is intentionally omitted.
    print("KERNEL_OK")
</pallas_src>

<mosaic_0001>
module attributes {stable_mosaic.version = 11 : i64} {
  func.func @encoder_layer_kernel(%arg0: i32, %arg1: memref<8x32xf32, #tpu.memory_space<vmem>>, %arg2: memref<32x96xf32, #tpu.memory_space<vmem>>, %arg3: memref<1x96xf32, #tpu.memory_space<vmem>>, %arg4: memref<32x32xf32, #tpu.memory_space<vmem>>, %arg5: memref<1x32xf32, #tpu.memory_space<vmem>>, %arg6: memref<32x64xf32, #tpu.memory_space<vmem>>, %arg7: memref<1x64xf32, #tpu.memory_space<vmem>>, %arg8: memref<64x32xf32, #tpu.memory_space<vmem>>, %arg9: memref<1x32xf32, #tpu.memory_space<vmem>>, %arg10: memref<8x32xf32, #tpu.memory_space<vmem>>) attributes {dimension_semantics = [#tpu.dimension_semantics<parallel>], iteration_bounds = array<i64: 2>, scalar_prefetch = 0 : i64, scratch_operands = 0 : i64, tpu.core_type = #tpu.core_type<tc>, window_params = [{transform_indices = @transform_0, window_bounds = array<i64: 8, 32>}, {pipeline_mode = #tpu.pipeline_mode<synchronous>, transform_indices = @transform_1, window_bounds = array<i64: 32, 96>}, {pipeline_mode = #tpu.pipeline_mode<synchronous>, transform_indices = @transform_2, window_bounds = array<i64: 1, 96>}, {pipeline_mode = #tpu.pipeline_mode<synchronous>, transform_indices = @transform_3, window_bounds = array<i64: 32, 32>}, {pipeline_mode = #tpu.pipeline_mode<synchronous>, transform_indices = @transform_4, window_bounds = array<i64: 1, 32>}, {pipeline_mode = #tpu.pipeline_mode<synchronous>, transform_indices = @transform_5, window_bounds = array<i64: 32, 64>}, {pipeline_mode = #tpu.pipeline_mode<synchronous>, transform_indices = @transform_6, window_bounds = array<i64: 1, 64>}, {pipeline_mode = #tpu.pipeline_mode<synchronous>, transform_indices = @transform_7, window_bounds = array<i64: 64, 32>}, {pipeline_mode = #tpu.pipeline_mode<synchronous>, transform_indices = @transform_8, window_bounds = array<i64: 1, 32>}, {transform_indices = @transform_9, window_bounds = array<i64: 8, 32>}]} {
    %c0 = arith.constant 0 : index
    %c0_0 = arith.constant 0 : index
    %0 = vector.load %arg1[%c0, %c0_0] : memref<8x32xf32, #tpu.memory_space<vmem>>, vector<8x32xf32>
    %c0_1 = arith.constant 0 : index
    %c0_2 = arith.constant 0 : index
    %1 = vector.load %arg2[%c0_1, %c0_2] : memref<32x96xf32, #tpu.memory_space<vmem>>, vector<32x96xf32>
    %cst = arith.constant dense<0.000000e+00> : vector<8x96xf32>
    %2 = tpu.matmul %0, %1, %cst {dimension_numbers = #tpu.dot_dimension_numbers<[1], [0], [0], [1], [0, 0, 1, 1], [], []>} : vector<8x32xf32>, vector<32x96xf32>, vector<8x96xf32> -> vector<8x96xf32>
    %c0_3 = arith.constant 0 : index
    %c0_4 = arith.constant 0 : index
    %3 = vector.load %arg3[%c0_3, %c0_4] : memref<1x96xf32, #tpu.memory_space<vmem>>, vector<1x96xf32>
    %4 = vector.broadcast %3 : vector<1x96xf32> to vector<8x96xf32>
    %5 = arith.addf %2, %4 : vector<8x96xf32>
    %6 = vector.extract_strided_slice %5 {offsets = [0, 0], sizes = [8, 32], strides = [1, 1]} : vector<8x96xf32> to vector<8x32xf32>
    %7 = vector.extract_strided_slice %5 {offsets = [0, 32], sizes = [8, 32], strides = [1, 1]} : vector<8x96xf32> to vector<8x32xf32>
    %8 = vector.extract_strided_slice %5 {offsets = [0, 64], sizes = [8, 32], strides = [1, 1]} : vector<8x96xf32> to vector<8x32xf32>
    %9 = vector.extract_strided_slice %6 {offsets = [0, 0], sizes = [8, 8], strides = [1, 1]} : vector<8x32xf32> to vector<8x8xf32>
    %10 = vector.extract_strided_slice %7 {offsets = [0, 0], sizes = [8, 8], strides = [1, 1]} : vector<8x32xf32> to vector<8x8xf32>
    %11 = vector.extract_strided_slice %8 {offsets = [0, 0], sizes = [8, 8], strides = [1, 1]} : vector<8x32xf32> to vector<8x8xf32>
    %12 = tpu.transpose %10, [1, 0] : vector<8x8xf32> -> vector<8x8xf32>
    %cst_5 = arith.constant dense<0.000000e+00> : vector<8x8xf32>
    %13 = tpu.matmul %9, %12, %cst_5 {dimension_numbers = #tpu.dot_dimension_numbers<[1], [0], [0], [1], [0, 0, 1, 1], [], []>} : vector<8x8xf32>, vector<8x8xf32>, vector<8x8xf32> -> vector<8x8xf32>
    %cst_6 = arith.constant 0.353553385 : f32
    %14 = vector.broadcast %cst_6 : f32 to vector<8x8xf32>
    %15 = arith.mulf %13, %14 : vector<8x8xf32>
    %cst_7 = arith.constant dense<0xFF800000> : vector<8xf32>
    %16 = vector.multi_reduction <maximumf>, %15, %cst_7 [1] : vector<8x8xf32> to vector<8xf32>
    %17 = vector.shape_cast %16 : vector<8xf32> to vector<8x1xf32>
    %18 = vector.broadcast %17 : vector<8x1xf32> to vector<8x8xf32>
    %19 = arith.subf %15, %18 : vector<8x8xf32>
    %20 = math.exp %19 : vector<8x8xf32>
    %cst_8 = arith.constant dense<0.000000e+00> : vector<8xf32>
    %21 = vector.multi_reduction <add>, %20, %cst_8 [1] : vector<8x8xf32> to vector<8xf32>
    %22 = vector.shape_cast %21 : vector<8xf32> to vector<8x1xf32>
    %23 = tpu.reciprocal %22 {approx = true} : vector<8x1xf32> -> vector<8x1xf32>
    %24 = vector.broadcast %23 : vector<8x1xf32> to vector<8x8xf32>
    %25 = arith.mulf %20, %24 : vector<8x8xf32>
    %cst_9 = arith.constant dense<0.000000e+00> : vector<8x8xf32>
    %26 = tpu.matmul %25, %11, %cst_9 {dimension_numbers = #tpu.dot_dimension_numbers<[1], [0], [0], [1], [0, 0, 1, 1], [], []>} : vector<8x8xf32>, vector<8x8xf32>, vector<8x8xf32> -> vector<8x8xf32>
    %27 = vector.extract_strided_slice %6 {offsets = [0, 8], sizes = [8, 8], strides = [1, 1]} : vector<8x32xf32> to vector<8x8xf32>
    %28 = vector.extract_strided_slice %7 {offsets = [0, 8], sizes = [8, 8], strides = [1, 1]} : vector<8x32xf32> to vector<8x8xf32>
    %29 = vector.extract_strided_slice %8 {offsets = [0, 8], sizes = [8, 8], strides = [1, 1]} : vector<8x32xf32> to vector<8x8xf32>
    %30 = tpu.transpose %28, [1, 0] : vector<8x8xf32> -> vector<8x8xf32>
    %cst_10 = arith.constant dense<0.000000e+00> : vector<8x8xf32>
    %31 = tpu.matmul %27, %30, %cst_10 {dimension_numbers = #tpu.dot_dimension_numbers<[1], [0], [0], [1], [0, 0, 1, 1], [], []>} : vector<8x8xf32>, vector<8x8xf32>, vector<8x8xf32> -> vector<8x8xf32>
    %cst_11 = arith.constant 0.353553385 : f32
    %32 = vector.broadcast %cst_11 : f32 to vector<8x8xf32>
    %33 = arith.mulf %31, %32 : vector<8x8xf32>
    %cst_12 = arith.constant dense<0xFF800000> : vector<8xf32>
    %34 = vector.multi_reduction <maximumf>, %33, %cst_12 [1] : vector<8x8xf32> to vector<8xf32>
    %35 = vector.shape_cast %34 : vector<8xf32> to vector<8x1xf32>
    %36 = vector.broadcast %35 : vector<8x1xf32> to vector<8x8xf32>
    %37 = arith.subf %33, %36 : vector<8x8xf32>
    %38 = math.exp %37 : vector<8x8xf32>
    %cst_13 = arith.constant dense<0.000000e+00> : vector<8xf32>
    %39 = vector.multi_reduction <add>, %38, %cst_13 [1] : vector<8x8xf32> to vector<8xf32>
    %40 = vector.shape_cast %39 : vector<8xf32> to vector<8x1xf32>
    %41 = tpu.reciprocal %40 {approx = true} : vector<8x1xf32> -> vector<8x1xf32>
    %42 = vector.broadcast %41 : vector<8x1xf32> to vector<8x8xf32>
    %43 = arith.mulf %38, %42 : vector<8x8xf32>
    %cst_14 = arith.constant dense<0.000000e+00> : vector<8x8xf32>
    %44 = tpu.matmul %43, %29, %cst_14 {dimension_numbers = #tpu.dot_dimension_numbers<[1], [0], [0], [1], [0, 0, 1, 1], [], []>} : vector<8x8xf32>, vector<8x8xf32>, vector<8x8xf32> -> vector<8x8xf32>
    %45 = vector.extract_strided_slice %6 {offsets = [0, 16], sizes = [8, 8], strides = [1, 1]} : vector<8x32xf32> to vector<8x8xf32>
    %46 = vector.extract_strided_slice %7 {offsets = [0, 16], sizes = [8, 8], strides = [1, 1]} : vector<8x32xf32> to vector<8x8xf32>
    %47 = vector.extract_strided_slice %8 {offsets = [0, 16], sizes = [8, 8], strides = [1, 1]} : vector<8x32xf32> to vector<8x8xf32>
    %48 = tpu.transpose %46, [1, 0] : vector<8x8xf32> -> vector<8x8xf32>
    %cst_15 = arith.constant dense<0.000000e+00> : vector<8x8xf32>
    %49 = tpu.matmul %45, %48, %cst_15 {dimension_numbers = #tpu.dot_dimension_numbers<[1], [0], [0], [1], [0, 0, 1, 1], [], []>} : vector<8x8xf32>, vector<8x8xf32>, vector<8x8xf32> -> vector<8x8xf32>
    %cst_16 = arith.constant 0.353553385 : f32
    %50 = vector.broadcast %cst_16 : f32 to vector<8x8xf32>
    %51 = arith.mulf %49, %50 : vector<8x8xf32>
    %cst_17 = arith.constant dense<0xFF800000> : vector<8xf32>
    %52 = vector.multi_reduction <maximumf>, %51, %cst_17 [1] : vector<8x8xf32> to vector<8xf32>
    %53 = vector.shape_cast %52 : vector<8xf32> to vector<8x1xf32>
    %54 = vector.broadcast %53 : vector<8x1xf32> to vector<8x8xf32>
    %55 = arith.subf %51, %54 : vector<8x8xf32>
    %56 = math.exp %55 : vector<8x8xf32>
    %cst_18 = arith.constant dense<0.000000e+00> : vector<8xf32>
    %57 = vector.multi_reduction <add>, %56, %cst_18 [1] : vector<8x8xf32> to vector<8xf32>
    %58 = vector.shape_cast %57 : vector<8xf32> to vector<8x1xf32>
    %59 = tpu.reciprocal %58 {approx = true} : vector<8x1xf32> -> vector<8x1xf32>
    %60 = vector.broadcast %59 : vector<8x1xf32> to vector<8x8xf32>
    %61 = arith.mulf %56, %60 : vector<8x8xf32>
    %cst_19 = arith.constant dense<0.000000e+00> : vector<8x8xf32>
    %62 = tpu.matmul %61, %47, %cst_19 {dimension_numbers = #tpu.dot_dimension_numbers<[1], [0], [0], [1], [0, 0, 1, 1], [], []>} : vector<8x8xf32>, vector<8x8xf32>, vector<8x8xf32> -> vector<8x8xf32>
    %63 = vector.extract_strided_slice %6 {offsets = [0, 24], sizes = [8, 8], strides = [1, 1]} : vector<8x32xf32> to vector<8x8xf32>
    %64 = vector.extract_strided_slice %7 {offsets = [0, 24], sizes = [8, 8], strides = [1, 1]} : vector<8x32xf32> to vector<8x8xf32>
    %65 = vector.extract_strided_slice %8 {offsets = [0, 24], sizes = [8, 8], strides = [1, 1]} : vector<8x32xf32> to vector<8x8xf32>
    %66 = tpu.transpose %64, [1, 0] : vector<8x8xf32> -> vector<8x8xf32>
    %cst_20 = arith.constant dense<0.000000e+00> : vector<8x8xf32>
    %67 = tpu.matmul %63, %66, %cst_20 {dimension_numbers = #tpu.dot_dimension_numbers<[1], [0], [0], [1], [0, 0, 1, 1], [], []>} : vector<8x8xf32>, vector<8x8xf32>, vector<8x8xf32> -> vector<8x8xf32>
    %cst_21 = arith.constant 0.353553385 : f32
    %68 = vector.broadcast %cst_21 : f32 to vector<8x8xf32>
    %69 = arith.mulf %67, %68 : vector<8x8xf32>
    %cst_22 = arith.constant dense<0xFF800000> : vector<8xf32>
    %70 = vector.multi_reduction <maximumf>, %69, %cst_22 [1] : vector<8x8xf32> to vector<8xf32>
    %71 = vector.shape_cast %70 : vector<8xf32> to vector<8x1xf32>
    %72 = vector.broadcast %71 : vector<8x1xf32> to vector<8x8xf32>
    %73 = arith.subf %69, %72 : vector<8x8xf32>
    %74 = math.exp %73 : vector<8x8xf32>
    %cst_23 = arith.constant dense<0.000000e+00> : vector<8xf32>
    %75 = vector.multi_reduction <add>, %74, %cst_23 [1] : vector<8x8xf32> to vector<8xf32>
    %76 = vector.shape_cast %75 : vector<8xf32> to vector<8x1xf32>
    %77 = tpu.reciprocal %76 {approx = true} : vector<8x1xf32> -> vector<8x1xf32>
    %78 = vector.broadcast %77 : vector<8x1xf32> to vector<8x8xf32>
    %79 = arith.mulf %74, %78 : vector<8x8xf32>
    %cst_24 = arith.constant dense<0.000000e+00> : vector<8x8xf32>
    %80 = tpu.matmul %79, %65, %cst_24 {dimension_numbers = #tpu.dot_dimension_numbers<[1], [0], [0], [1], [0, 0, 1, 1], [], []>} : vector<8x8xf32>, vector<8x8xf32>, vector<8x8xf32> -> vector<8x8xf32>
    %81 = tpu.concatenate %26, %44, %62, %80 in 1 : vector<8x8xf32>, vector<8x8xf32>, vector<8x8xf32>, vector<8x8xf32> -> vector<8x32xf32>
    %c0_25 = arith.constant 0 : index
    %c0_26 = arith.constant 0 : index
    %82 = vector.load %arg4[%c0_25, %c0_26] : memref<32x32xf32, #tpu.memory_space<vmem>>, vector<32x32xf32>
    %cst_27 = arith.constant dense<0.000000e+00> : vector<8x32xf32>
    %83 = tpu.matmul %81, %82, %cst_27 {dimension_numbers = #tpu.dot_dimension_numbers<[1], [0], [0], [1], [0, 0, 1, 1], [], []>} : vector<8x32xf32>, vector<32x32xf32>, vector<8x32xf32> -> vector<8x32xf32>
    %c0_28 = arith.constant 0 : index
    %c0_29 = arith.constant 0 : index
    %84 = vector.load %arg5[%c0_28, %c0_29] : memref<1x32xf32, #tpu.memory_space<vmem>>, vector<1x32xf32>
    %85 = vector.broadcast %84 : vector<1x32xf32> to vector<8x32xf32>
    %86 = arith.addf %83, %85 : vector<8x32xf32>
    %87 = arith.addf %0, %86 : vector<8x32xf32>
    %c0_30 = arith.constant 0 : index
    %c0_31 = arith.constant 0 : index
    %88 = vector.load %arg6[%c0_30, %c0_31] : memref<32x64xf32, #tpu.memory_space<vmem>>, vector<32x64xf32>
    %cst_32 = arith.constant dense<0.000000e+00> : vector<8x64xf32>
    %89 = tpu.matmul %87, %88, %cst_32 {dimension_numbers = #tpu.dot_dimension_numbers<[1], [0], [0], [1], [0, 0, 1, 1], [], []>} : vector<8x32xf32>, vector<32x64xf32>, vector<8x64xf32> -> vector<8x64xf32>
    %c0_33 = arith.constant 0 : index
    %c0_34 = arith.constant 0 : index
    %90 = vector.load %arg7[%c0_33, %c0_34] : memref<1x64xf32, #tpu.memory_space<vmem>>, vector<1x64xf32>
    %91 = vector.broadcast %90 : vector<1x64xf32> to vector<8x64xf32>
    %92 = arith.addf %89, %91 : vector<8x64xf32>
    %cst_35 = arith.constant 0.000000e+00 : f32
    %93 = vector.broadcast %cst_35 : f32 to vector<8x64xf32>
    %94 = arith.maximumf %92, %93 : vector<8x64xf32>
    %c0_36 = arith.constant 0 : index
    %c0_37 = arith.constant 0 : index
    %95 = vector.load %arg8[%c0_36, %c0_37] : memref<64x32xf32, #tpu.memory_space<vmem>>, vector<64x32xf32>
    %cst_38 = arith.constant dense<0.000000e+00> : vector<8x32xf32>
    %96 = tpu.matmul %94, %95, %cst_38 {dimension_numbers = #tpu.dot_dimension_numbers<[1], [0], [0], [1], [0, 0, 1, 1], [], []>} : vector<8x64xf32>, vector<64x32xf32>, vector<8x32xf32> -> vector<8x32xf32>
    %c0_39 = arith.constant 0 : index
    %c0_40 = arith.constant 0 : index
    %97 = vector.load %arg9[%c0_39, %c0_40] : memref<1x32xf32, #tpu.memory_space<vmem>>, vector<1x32xf32>
    %98 = vector.broadcast %97 : vector<1x32xf32> to vector<8x32xf32>
    %99 = arith.addf %96, %98 : vector<8x32xf32>
    %100 = arith.addf %87, %99 : vector<8x32xf32>
    %c0_41 = arith.constant 0 : index
    %c0_42 = arith.constant 0 : index
    %101 = vector.load %arg10[%c0_41, %c0_42] : memref<8x32xf32, #tpu.memory_space<vmem>>, vector<8x32xf32>
    tpu.vector_store %arg10[%c0_41, %c0_42], %100 {strides = array<i32>} : memref<8x32xf32, #tpu.memory_space<vmem>>, vector<8x32xf32>,
    return
  }
  func.func @transform_0(%arg0: i32) -> (i32, i32) {
    %c0_i32 = arith.constant 0 : i32
    %c0_i32_0 = arith.constant 0 : i32
    return %arg0, %c0_i32 : i32, i32
  }
  func.func @transform_1(%arg0: i32) -> (i32, i32) {
    %c0_i32 = arith.constant 0 : i32
    %c0_i32_0 = arith.constant 0 : i32
    %c0_i32_1 = arith.constant 0 : i32
    return %c0_i32, %c0_i32_0 : i32, i32
  }
  func.func @transform_2(%arg0: i32) -> (i32, i32) {
    %c0_i32 = arith.constant 0 : i32
    %c0_i32_0 = arith.constant 0 : i32
    %c0_i32_1 = arith.constant 0 : i32
    return %c0_i32, %c0_i32_0 : i32, i32
  }
  func.func @transform_3(%arg0: i32) -> (i32, i32) {
    %c0_i32 = arith.constant 0 : i32
    %c0_i32_0 = arith.constant 0 : i32
    %c0_i32_1 = arith.constant 0 : i32
    return %c0_i32, %c0_i32_0 : i32, i32
  }
  func.func @transform_4(%arg0: i32) -> (i32, i32) {
    %c0_i32 = arith.constant 0 : i32
    %c0_i32_0 = arith.constant 0 : i32
    %c0_i32_1 = arith.constant 0 : i32
    return %c0_i32, %c0_i32_0 : i32, i32
  }
  func.func @transform_5(%arg0: i32) -> (i32, i32) {
    %c0_i32 = arith.constant 0 : i32
    %c0_i32_0 = arith.constant 0 : i32
    %c0_i32_1 = arith.constant 0 : i32
    return %c0_i32, %c0_i32_0 : i32, i32
  }
  func.func @transform_6(%arg0: i32) -> (i32, i32) {
    %c0_i32 = arith.constant 0 : i32
    %c0_i32_0 = arith.constant 0 : i32
    %c0_i32_1 = arith.constant 0 : i32
    return %c0_i32, %c0_i32_0 : i32, i32
  }
  func.func @transform_7(%arg0: i32) -> (i32, i32) {
    %c0_i32 = arith.constant 0 : i32
    %c0_i32_0 = arith.constant 0 : i32
    %c0_i32_1 = arith.constant 0 : i32
    return %c0_i32, %c0_i32_0 : i32, i32
  }
  func.func @transform_8(%arg0: i32) -> (i32, i32) {
    %c0_i32 = arith.constant 0 : i32
    %c0_i32_0 = arith.constant 0 : i32
    %c0_i32_1 = arith.constant 0 : i32
    return %c0_i32, %c0_i32_0 : i32, i32
  }
  func.func @transform_9(%arg0: i32) -> (i32, i32) {
    %c0_i32 = arith.constant 0 : i32
    %c0_i32_0 = arith.constant 0 : i32
    return %arg0, %c0_i32 : i32, i32
  }
}

</mosaic_0001>

<llo_original>
// kernel: tpu_custom_call.1
$region0: #{tpu_custom_call.1}
  #allocation0 [shape = 'u32[]', space=smem, size = 0x4, offset = 0x4, fixed_abs, tag = 'smem constant byte address 0x4 - core index']
  #allocation1 [shape = 'u32[72,128]{1,0:T(1,128)}', space=vmem, size = 0x9000, scoped, tag = 'internal scratch']
  %s0 = inlined_call_operand.hbm [shape: f32[16,32], index: 0, kind: input, shape index: {}]
  %s1 = inlined_call_operand.vmem [shape: f32[32,96], index: 1, kind: input, shape index: {}]
  %s2 = inlined_call_operand.vmem [shape: f32[1,96], index: 2, kind: input, shape index: {}]
  %s3 = inlined_call_operand.vmem [shape: f32[32,32], index: 3, kind: input, shape index: {}]
  %s4 = inlined_call_operand.vmem [shape: f32[1,32], index: 4, kind: input, shape index: {}]
  %s5 = inlined_call_operand.vmem [shape: f32[32,64], index: 5, kind: input, shape index: {}]
  %s6 = inlined_call_operand.vmem [shape: f32[1,64], index: 6, kind: input, shape index: {}]
  %s7 = inlined_call_operand.vmem [shape: f32[64,32], index: 7, kind: input, shape index: {}]
  %s8 = inlined_call_operand.vmem [shape: f32[1,32], index: 8, kind: input, shape index: {}]
  %s9 = inlined_call_operand.hbm [shape: f32[16,32], index: 9, kind: output, shape index: {}]
  %s10 = sld [smem:[#allocation0]]
  $region73: #{tpu_custom_call.1} parent=0
    _
  %s12 = ssub.s32 1, %s10
  %s13 = scalar_select 0, %s12, %s10
  $region1: #{tpu_custom_call.1} parent=0
    #allocation2 [shape = 'u8[8192]{0}', space=vmem, size = 0x2000, scoped, tag = 'input window, operand 0']
    #allocation3 [shape = 's32[2]{0}', space=sflag, size = 0x8, scoped, tag = 'scoped memory for tpu_custom_call.1']
    #allocation4 [shape = 's32[2]{0}', space=sflag, size = 0x8, scoped, tag = 'scoped memory for tpu_custom_call.1']
    #allocation5 [shape = 'u8[8192]{0}', space=vmem, size = 0x2000, scoped, tag = 'output window, operand 0']
    %14 = vsyncpa [#allocation3], 0
    %s15 = scalar_lea.sflag [#allocation3], 1
    %16 = vsyncpa %s15, 0
    %17 = vsyncpa [#allocation4], 0
    %s18 = scalar_lea.sflag [#allocation4], 1
    %19 = vsyncpa %s18, 0
    loop: start=0, step=1, limit=4
    $region2: #{tpu_custom_call.1} parent=1 // loop_pre_header
      _
    $region3: #{tpu_custom_call.1} parent=1 // loop_header
      %s21 = sphi 0, %s25
      %p22 = scmp.ge.s32.totalorder %s21, 4
      %s31 = sphi 0, %s33
      %s34 = sphi 0, %s31
      %s35 = sphi 0, %s34
      %s51 = sphi 0, %s35
      %s55 = sphi 0, %s55
      %s57 = sphi 0, %s55
      %s58 = sphi 0, %s57
      %s72 = sphi 0, %s58
      %s76 = sphi 0, %s76
      %s78 = sphi 0, %s76
      %s79 = sphi 0, %s78
      %s93 = sphi 0, %s79
      %s97 = sphi 0, %s97
      %s99 = sphi 0, %s97
      %s100 = sphi 0, %s99
      %s114 = sphi 0, %s100
      %s118 = sphi 0, %s118
      %s120 = sphi 0, %s118
      %s121 = sphi 0, %s120
      %s135 = sphi 0, %s121
      %s139 = sphi 0, %s139
      %s141 = sphi 0, %s139
      %s142 = sphi 0, %s141
      %s156 = sphi 0, %s142
      %s160 = sphi 0, %s160
      %s162 = sphi 0, %s160
      %s163 = sphi 0, %s162
      %s177 = sphi 0, %s163
      %s181 = sphi 0, %s181
      %s183 = sphi 0, %s181
      %s184 = sphi 0, %s183
      %s198 = sphi 0, %s184
      %s202 = sphi 0, %s202
      %s204 = sphi 0, %s202
      %s205 = sphi 0, %s204
      %s219 = sphi 0, %s205
      %s225 = sphi 0, %s227
      %s228 = sphi 0, %s225
      %s229 = sphi 0, %s228
      %s245 = sphi 0, %s229
    $region4: #{tpu_custom_call.1} parent=1 // loop_header_branch
      %24 = sbr.rel (%p22) target = $region8
    $region5: #{tpu_custom_call.1} parent=1 // loop_body
      %s26 = ssub.s32 %s21, 1
      %s27 = ssub.s32 %s21, 2
      %s28 = sadd.s32 %s21, 1
      %s29 = ssub.s32 %s21, %s28
      %p30 = scmp.eq.s32.totalorder %s29, 0
      %s32 = sadd.s32 %s31, 1
      %s33 = scalar_select %p30, %s31, %s32
      %p36 = pneg %p30
      %p37 = scmp.eq.s32.totalorder %s21, 1
      %p38 = por %p36, %p37
      %p39 = scmp.ne.s32.totalorder %s31, %s34
      %p40 = scmp.eq.s32.totalorder %s21, 0
      %p41 = por %p39, %p40
      %p42 = scmp.ne.s32.totalorder %s31, %s34
      %p43 = scmp.eq.s32.totalorder %s26, 1
      %p44 = por %p42, %p43
      %p45 = scmp.ne.s32.totalorder %s34, %s35
      %p46 = scmp.eq.s32.totalorder %s26, 0
      %p47 = por %p45, %p46
      %p48 = scmp.ne.s32.totalorder %s34, %s35
      %p49 = scmp.eq.s32.totalorder %s27, 1
      %p50 = por %p48, %p49
      %p52 = scmp.ne.s32.totalorder %s35, %s51
      %p53 = scmp.eq.s32.totalorder %s27, 0
      %p54 = por %p52, %p53
      %s56 = sadd.s32 %s55, 1
      %p59 = scmp.eq.s32.totalorder %s21, 1
      %p60 = scmp.ne.s32.totalorder %s55, %s57
      %p61 = scmp.eq.s32.totalorder %s21, 0
      %p62 = por %p60, %p61
      %p63 = scmp.ne.s32.totalorder %s55, %s57
      %p64 = scmp.eq.s32.totalorder %s26, 1
      %p65 = por %p63, %p64
      %p66 = scmp.ne.s32.totalorder %s57, %s58
      %p67 = scmp.eq.s32.totalorder %s26, 0
      %p68 = por %p66, %p67
      %p69 = scmp.ne.s32.totalorder %s57, %s58
      %p70 = scmp.eq.s32.totalorder %s27, 1
      %p71 = por %p69, %p70
      %p73 = scmp.ne.s32.totalorder %s58, %s72
      %p74 = scmp.eq.s32.totalorder %s27, 0
      %p75 = por %p73, %p74
      %s77 = sadd.s32 %s76, 1
      %p80 = scmp.eq.s32.totalorder %s21, 1
      %p81 = scmp.ne.s32.totalorder %s76, %s78
      %p82 = scmp.eq.s32.totalorder %s21, 0
      %p83 = por %p81, %p82
      %p84 = scmp.ne.s32.totalorder %s76, %s78
      %p85 = scmp.eq.s32.totalorder %s26, 1
      %p86 = por %p84, %p85
      %p87 = scmp.ne.s32.totalorder %s78, %s79
      %p88 = scmp.eq.s32.totalorder %s26, 0
      %p89 = por %p87, %p88
      %p90 = scmp.ne.s32.totalorder %s78, %s79
      %p91 = scmp.eq.s32.totalorder %s27, 1
      %p92 = por %p90, %p91
      %p94 = scmp.ne.s32.totalorder %s79, %s93
      %p95 = scmp.eq.s32.totalorder %s27, 0
      %p96 = por %p94, %p95
      %s98 = sadd.s32 %s97, 1
      %p101 = scmp.eq.s32.totalorder %s21, 1
      %p102 = scmp.ne.s32.totalorder %s97, %s99
      %p103 = scmp.eq.s32.totalorder %s21, 0
      %p104 = por %p102, %p103
      %p105 = scmp.ne.s32.totalorder %s97, %s99
      %p106 = scmp.eq.s32.totalorder %s26, 1
      %p107 = por %p105, %p106
      %p108 = scmp.ne.s32.totalorder %s99, %s100
      %p109 = scmp.eq.s32.totalorder %s26, 0
      %p110 = por %p108, %p109
      %p111 = scmp.ne.s32.totalorder %s99, %s100
      %p112 = scmp.eq.s32.totalorder %s27, 1
      %p113 = por %p111, %p112
      %p115 = scmp.ne.s32.totalorder %s100, %s114
      %p116 = scmp.eq.s32.totalorder %s27, 0
      %p117 = por %p115, %p116
      %s119 = sadd.s32 %s118, 1
      %p122 = scmp.eq.s32.totalorder %s21, 1
      %p123 = scmp.ne.s32.totalorder %s118, %s120
      %p124 = scmp.eq.s32.totalorder %s21, 0
      %p125 = por %p123, %p124
      %p126 = scmp.ne.s32.totalorder %s118, %s120
      %p127 = scmp.eq.s32.totalorder %s26, 1
      %p128 = por %p126, %p127
      %p129 = scmp.ne.s32.totalorder %s120, %s121
      %p130 = scmp.eq.s32.totalorder %s26, 0
      %p131 = por %p129, %p130
      %p132 = scmp.ne.s32.totalorder %s120, %s121
      %p133 = scmp.eq.s32.totalorder %s27, 1
      %p134 = por %p132, %p133
      %p136 = scmp.ne.s32.totalorder %s121, %s135
      %p137 = scmp.eq.s32.totalorder %s27, 0
      %p138 = por %p136, %p137
      %s140 = sadd.s32 %s139, 1
      %p143 = scmp.eq.s32.totalorder %s21, 1
      %p144 = scmp.ne.s32.totalorder %s139, %s141
      %p145 = scmp.eq.s32.totalorder %s21, 0
      %p146 = por %p144, %p145
      %p147 = scmp.ne.s32.totalorder %s139, %s141
      %p148 = scmp.eq.s32.totalorder %s26, 1
      %p149 = por %p147, %p148
      %p150 = scmp.ne.s32.totalorder %s141, %s142
      %p151 = scmp.eq.s32.totalorder %s26, 0
      %p152 = por %p150, %p151
      %p153 = scmp.ne.s32.totalorder %s141, %s142
      %p154 = scmp.eq.s32.totalorder %s27, 1
      %p155 = por %p153, %p154
      %p157 = scmp.ne.s32.totalorder %s142, %s156
      %p158 = scmp.eq.s32.totalorder %s27, 0
      %p159 = por %p157, %p158
      %s161 = sadd.s32 %s160, 1
      %p164 = scmp.eq.s32.totalorder %s21, 1
      %p165 = scmp.ne.s32.totalorder %s160, %s162
      %p166 = scmp.eq.s32.totalorder %s21, 0
      %p167 = por %p165, %p166
      %p168 = scmp.ne.s32.totalorder %s160, %s162
      %p169 = scmp.eq.s32.totalorder %s26, 1
      %p170 = por %p168, %p169
      %p171 = scmp.ne.s32.totalorder %s162, %s163
      %p172 = scmp.eq.s32.totalorder %s26, 0
      %p173 = por %p171, %p172
      %p174 = scmp.ne.s32.totalorder %s162, %s163
      %p175 = scmp.eq.s32.totalorder %s27, 1
      %p176 = por %p174, %p175
      %p178 = scmp.ne.s32.totalorder %s163, %s177
      %p179 = scmp.eq.s32.totalorder %s27, 0
      %p180 = por %p178, %p179
      %s182 = sadd.s32 %s181, 1
      %p185 = scmp.eq.s32.totalorder %s21, 1
      %p186 = scmp.ne.s32.totalorder %s181, %s183
      %p187 = scmp.eq.s32.totalorder %s21, 0
      %p188 = por %p186, %p187
      %p189 = scmp.ne.s32.totalorder %s181, %s183
      %p190 = scmp.eq.s32.totalorder %s26, 1
      %p191 = por %p189, %p190
      %p192 = scmp.ne.s32.totalorder %s183, %s184
      %p193 = scmp.eq.s32.totalorder %s26, 0
      %p194 = por %p192, %p193
      %p195 = scmp.ne.s32.totalorder %s183, %s184
      %p196 = scmp.eq.s32.totalorder %s27, 1
      %p197 = por %p195, %p196
      %p199 = scmp.ne.s32.totalorder %s184, %s198
      %p200 = scmp.eq.s32.totalorder %s27, 0
      %p201 = por %p199, %p200
      %s203 = sadd.s32 %s202, 1
      %p206 = scmp.eq.s32.totalorder %s21, 1
      %p207 = scmp.ne.s32.totalorder %s202, %s204
      %p208 = scmp.eq.s32.totalorder %s21, 0
      %p209 = por %p207, %p208
      %p210 = scmp.ne.s32.totalorder %s202, %s204
      %p211 = scmp.eq.s32.totalorder %s26, 1
      %p212 = por %p210, %p211
      %p213 = scmp.ne.s32.totalorder %s204, %s205
      %p214 = scmp.eq.s32.totalorder %s26, 0
      %p215 = por %p213, %p214
      %p216 = scmp.ne.s32.totalorder %s204, %s205
      %p217 = scmp.eq.s32.totalorder %s27, 1
      %p218 = por %p216, %p217
      %p220 = scmp.ne.s32.totalorder %s205, %s219
      %p221 = scmp.eq.s32.totalorder %s27, 0
      %p222 = por %p220, %p221
      %s223 = ssub.s32 %s21, %s28
      %p224 = scmp.eq.s32.totalorder %s223, 0
      %s226 = sadd.s32 %s225, 1
      %s227 = scalar_select %p224, %s225, %s226
      %p230 = pneg %p224
      %p231 = scmp.eq.s32.totalorder %s21, 1
      %p232 = por %p230, %p231
      %p233 = scmp.ne.s32.totalorder %s225, %s228
      %p234 = scmp.eq.s32.totalorder %s21, 0
      %p235 = por %p233, %p234
      %p236 = scmp.ne.s32.totalorder %s225, %s228
      %p237 = scmp.eq.s32.totalorder %s26, 1
      %p238 = por %p236, %p237
      %p239 = scmp.ne.s32.totalorder %s228, %s229
      %p240 = scmp.eq.s32.totalorder %s26, 0
      %p241 = por %p239, %p240
      %p242 = scmp.ne.s32.totalorder %s228, %s229
      %p243 = scmp.eq.s32.totalorder %s27, 1
      %p244 = por %p242, %p243
      %p246 = scmp.ne.s32.totalorder %s229, %s245
      %p247 = scmp.eq.s32.totalorder %s27, 0
      %p248 = por %p246, %p247
      %p249 = scmp.le.s32.totalorder 1, %s21
      %p250 = scmp.lt.s32.totalorder %s21, 3
      %p251 = pnand %p249, %p250
      %p252 = pneg %p251
      // Predicated region
      $region9: #{tpu_custom_call.1} parent=5 // pred_check
        _
      $region10: #{tpu_custom_call.1} parent=5 // pred_check_branch
        %254 = sbr.rel (%p251) target = $region12
      $region11: #{tpu_custom_call.1} parent=5 // pred_region
        %s255 = ssub.s32 %s21, 1
        // Predicated region
        $region13: #{tpu_custom_call.1} parent=11 // pred_check
          %p256 = pneg %p68
        $region14: #{tpu_custom_call.1} parent=11 // pred_check_branch
          %258 = sbr.rel (%p256) target = $region16
        $region15: #{tpu_custom_call.1} parent=11 // pred_region
          _
        $region16: #{tpu_custom_call.1} parent=11 // pred_fallthru
          _
        // Predicated region
        $region17: #{tpu_custom_call.1} parent=11 // pred_check
          %p259 = pneg %p89
        $region18: #{tpu_custom_call.1} parent=11 // pred_check_branch
          %261 = sbr.rel (%p259) target = $region20
        $region19: #{tpu_custom_call.1} parent=11 // pred_region
          _
        $region20: #{tpu_custom_call.1} parent=11 // pred_fallthru
          _
        // Predicated region
        $region21: #{tpu_custom_call.1} parent=11 // pred_check
          %p262 = pneg %p110
        $region22: #{tpu_custom_call.1} parent=11 // pred_check_branch
          %264 = sbr.rel (%p262) target = $region24
        $region23: #{tpu_custom_call.1} parent=11 // pred_region
          _
        $region24: #{tpu_custom_call.1} parent=11 // pred_fallthru
          _
        // Predicated region
        $region25: #{tpu_custom_call.1} parent=11 // pred_check
          %p265 = pneg %p131
        $region26: #{tpu_custom_call.1} parent=11 // pred_check_branch
          %267 = sbr.rel (%p265) target = $region28
        $region27: #{tpu_custom_call.1} parent=11 // pred_region
          _
        $region28: #{tpu_custom_call.1} parent=11 // pred_fallthru
          _
        // Predicated region
        $region29: #{tpu_custom_call.1} parent=11 // pred_check
          %p268 = pneg %p152
        $region30: #{tpu_custom_call.1} parent=11 // pred_check_branch
          %270 = sbr.rel (%p268) target = $region32
        $region31: #{tpu_custom_call.1} parent=11 // pred_region
          _
        $region32: #{tpu_custom_call.1} parent=11 // pred_fallthru
          _
        // Predicated region
        $region33: #{tpu_custom_call.1} parent=11 // pred_check
          %p271 = pneg %p173
        $region34: #{tpu_custom_call.1} parent=11 // pred_check_branch
          %273 = sbr.rel (%p271) target = $region36
        $region35: #{tpu_custom_call.1} parent=11 // pred_region
          _
        $region36: #{tpu_custom_call.1} parent=11 // pred_fallthru
          _
        // Predicated region
        $region37: #{tpu_custom_call.1} parent=11 // pred_check
          %p274 = pneg %p194
        $region38: #{tpu_custom_call.1} parent=11 // pred_check_branch
          %276 = sbr.rel (%p274) target = $region40
        $region39: #{tpu_custom_call.1} parent=11 // pred_region
          _
        $region40: #{tpu_custom_call.1} parent=11 // pred_fallthru
          _
        // Predicated region
        $region41: #{tpu_custom_call.1} parent=11 // pred_check
          %p277 = pneg %p215
        $region42: #{tpu_custom_call.1} parent=11 // pred_check_branch
          %279 = sbr.rel (%p277) target = $region44
        $region43: #{tpu_custom_call.1} parent=11 // pred_region
          _
        $region44: #{tpu_custom_call.1} parent=11 // pred_fallthru
          _
      $region12: #{tpu_custom_call.1} parent=5 // pred_fallthru
        _
      %p280 = scmp.lt.s32.totalorder %s21, 2
      // Predicated region
      $region45: #{tpu_custom_call.1} parent=5 // pred_check
        %p281 = pneg %p280
      $region46: #{tpu_custom_call.1} parent=5 // pred_check_branch
        %283 = sbr.rel (%p281) target = $region48
      $region47: #{tpu_custom_call.1} parent=5 // pred_region
        // Predicated region
        $region49: #{tpu_custom_call.1} parent=47 // pred_check
          %p284 = pneg %p41
        $region50: #{tpu_custom_call.1} parent=47 // pred_check_branch
          %286 = sbr.rel (%p284) target = $region52
        $region51: #{tpu_custom_call.1} parent=47 // pred_region
          %s287 = sand.u32 %s31, 1
          %s288 = scalar_lea.sflag [#allocation3], %s287
          %s289 = sand.u32 %s31, 1
          %s290 = smul.addr %s289, 8
          %s291 = scalar_lea.vmem [#allocation2], %s290
          %293 = vsyncadd %s288, 0
          %s294 = smul.addr %s21, 8
          %s295 = scalar_lea.hbm %s0, %s294
          %s297 = sshll.u32 %s295, 4
          %s298 = int_to_ptr.hbm [resolvable:$true] %s297
          %s299 = sshll.u32 %s291, 4
          %s300 = int_to_ptr.vmem [resolvable:$true] %s299
          %302 = dma.hbm_to_vmem [thread:$0]  %s298, 128, %s300, %s288
        $region52: #{tpu_custom_call.1} parent=47 // pred_fallthru
          _
      $region48: #{tpu_custom_call.1} parent=5 // pred_fallthru
        _
      %p303 = scmp.le.s32.totalorder 1, %s21
      %p304 = scmp.lt.s32.totalorder %s21, 3
      %p305 = pnand %p303, %p304
      %p306 = pneg %p305
      // Predicated region
      $region53: #{tpu_custom_call.1} parent=5 // pred_check
        _
      $region54: #{tpu_custom_call.1} parent=5 // pred_check_branch
        %308 = sbr.rel (%p305) target = $region56
      $region55: #{tpu_custom_call.1} parent=5 // pred_region
        %s309 = ssub.s32 %s21, 1
        %s310 = sand.u32 %s34, 1
        %s311 = scalar_lea.sflag [#allocation3], %s310
        %s312 = sand.u32 %s34, 1
        %s313 = smul.addr %s312, 8
        %s314 = scalar_lea.vmem [#allocation2], %s313
        // Predicated region
        $region57: #{tpu_custom_call.1} parent=55 // pred_check
          %p315 = pneg %p47
        $region58: #{tpu_custom_call.1} parent=55 // pred_check_branch
          %317 = sbr.rel (%p315) target = $region60
        $region59: #{tpu_custom_call.1} parent=55 // pred_region
          %319 = dma.done %s311, 128
        $region60: #{tpu_custom_call.1} parent=55 // pred_fallthru
          _
        %s320 = sand.u32 %s34, 1
        %s321 = scalar_lea.sflag [#allocation3], %s320
        %s322 = sand.u32 %s34, 1
        %s323 = smul.addr %s322, 8
        %s324 = scalar_lea.vmem [#allocation2], %s323
        %p325 = pneg %p47
        %p326 = pneg %p44
        %p327 = pneg %p68
        %p328 = pneg %p65
        %p329 = pneg %p89
        %p330 = pneg %p86
        %p331 = pneg %p110
        %p332 = pneg %p107
        %p333 = pneg %p131
        %p334 = pneg %p128
        %p335 = pneg %p152
        %p336 = pneg %p149
        %p337 = pneg %p173
        %p338 = pneg %p170
        %p339 = pneg %p194
        %p340 = pneg %p191
        %p341 = pneg %p215
        %p342 = pneg %p212
        %p343 = pneg %p241
        %p344 = pneg %p238
        %s345 = sand.u32 %s228, 1
        %s346 = scalar_lea.sflag [#allocation4], %s345
        %s347 = sand.u32 %s228, 1
        %s348 = smul.addr %s347, 8
        %s349 = scalar_lea.vmem [#allocation5], %s348
        %v350 = vld [vmem:[%s314] sm:$0xff]
        %v351 = vld [vmem:[%s1] sm:$0xff]
        %v352 = vld [vmem:[%s1 + $0x8] sm:$0xff]
        %v353 = vld [vmem:[%s1 + $0x10] sm:$0xff]
        %v354 = vld [vmem:[%s1 + $0x18] sm:$0xff]
        %v355 = vld [vmem:[%s2] sm:$0x1]
        %v357 = vperm.slane %v355, 0
        %vm359 = vcmask 261120
        %v361 = vsel %vm359, %v350, 0
        %363 = vmatpush.msra.mxu0 0.0
        %364 = vmatpush.msra.mxu0 0.0
        %365 = vmatpush.msra.mxu0 0.0
        %366 = vmatpush.msra.mxu0 0.0
        %367 = vmatpush.msra.mxu0 0.0
        %368 = vmatpush.msra.mxu0 0.0
        %369 = vmatpush.msra.mxu0 0.0
        %370 = vmatpush.msra.mxu0 0.0
        %371 = vmatpush.msra.mxu0 0.0
        %372 = vmatpush.msra.mxu0 0.0
        %373 = vmatpush.msra.mxu0 0.0
        %374 = vmatpush.msra.mxu0 0.0
        %375 = vmatpush.msra.mxu0 %v354
        %376 = vmatpush.msra.mxu0 %v353
        %377 = vmatpush.msra.mxu0 %v352
        %378 = vmatpush.msra.mxu0 %v351
        %379 = vmatmul.f32.gmra.mxu0 %v361
        %v380 = vpop.f32.mrf.mxu0
        %v381 = vadd.f32 %v357, %v380
        %382 = vdwg.mxu0
        %384 = vrot.lane.b32.xlu0 %v381, 96
        %v385 = vpop.permute.xlu0 %384
        %vm386 = vcmask 64512
        %v387 = vsel %vm386, %v381, 0
        %v389 = vsel %vm386, %v385, 0
        %391 = vmatpush.xpose.msra.mxu0 0.0
        %392 = vmatpush.xpose.msra.mxu0 0.0
        %393 = vmatpush.xpose.msra.mxu0 0.0
        %394 = vmatpush.xpose.msra.mxu0 0.0
        %395 = vmatpush.xpose.msra.mxu0 0.0
        %396 = vmatpush.xpose.msra.mxu0 0.0
        %397 = vmatpush.xpose.msra.mxu0 0.0
        %398 = vmatpush.xpose.msra.mxu0 0.0
        %399 = vmatpush.xpose.msra.mxu0 0.0
        %400 = vmatpush.xpose.msra.mxu0 0.0
        %401 = vmatpush.xpose.msra.mxu0 0.0
        %402 = vmatpush.xpose.msra.mxu0 0.0
        %403 = vmatpush.xpose.msra.mxu0 0.0
        %404 = vmatpush.xpose.msra.mxu0 0.0
        %405 = vmatpush.xpose.msra.mxu0 0.0
        %406 = vmatpush.xpose.msra.mxu0 %v389
        %407 = vmatmul.f32.gmra.mxu0 %v387
        %v408 = vpop.f32.mrf.mxu0
        %v409 = vadd.f32 0.0, %v408
        %410 = vdwg.mxu0
        %v411 = vmul.f32 %v409, 0.35355338
        %v412 = vsel %vm386, %v411, -inf
        %413 = vmax.xlane.f32.xlu0 %v412
        %v414 = vpop.xlane.xlu0 %413
        %v415 = vsub.f32 %v411, %v414
        %v416 = vmul.f32 %v415, 1.442695
        %v417 = vpow.pop %v416
        %v418 = vsel %vm386, %v417, 0.0
        %419 = vadd.xlane.f32.xlu0 %v418
        %v420 = vpop.xlane.xlu0 %419
        %v421 = vrcp.pop %v420
        %v422 = vmul.f32 %v417, %v421
        %423 = vrot.lane.b32.xlu0 %v381, 64
        %v424 = vpop.permute.xlu0 %423
        %v427 = vsel %vm386, %v422, 0
        %429 = vmatpush.msra.mxu0 0.0
        %430 = vmatpush.msra.mxu0 0.0
        %431 = vmatpush.msra.mxu0 0.0
        %432 = vmatpush.msra.mxu0 0.0
        %433 = vmatpush.msra.mxu0 0.0
        %434 = vmatpush.msra.mxu0 0.0
        %435 = vmatpush.msra.mxu0 0.0
        %436 = vmatpush.msra.mxu0 0.0
        %437 = vmatpush.msra.mxu0 0.0
        %438 = vmatpush.msra.mxu0 0.0
        %439 = vmatpush.msra.mxu0 0.0
        %440 = vmatpush.msra.mxu0 0.0
        %441 = vmatpush.msra.mxu0 0.0
        %442 = vmatpush.msra.mxu0 0.0
        %443 = vmatpush.msra.mxu0 0.0
        %444 = vmatpush.msra.mxu0 %v424
        %445 = vmatmul.f32.gmra.mxu0 %v427
        %v446 = vpop.f32.mrf.mxu0
        %v447 = vadd.f32 0.0, %v446
        %448 = vdwg.mxu0
        %449 = vrot.lane.b32.xlu0 %v381, 120
        %v450 = vpop.permute.xlu0 %449
        %451 = vrot.lane.b32.xlu0 %v381, 88
        %v452 = vpop.permute.xlu0 %451
        %v453 = vsel %vm386, %v450, 0
        %v455 = vsel %vm386, %v452, 0
        %457 = vmatpush.xpose.msra.mxu0 0.0
        %458 = vmatpush.xpose.msra.mxu0 0.0
        %459 = vmatpush.xpose.msra.mxu0 0.0
        %460 = vmatpush.xpose.msra.mxu0 0.0
        %461 = vmatpush.xpose.msra.mxu0 0.0
        %462 = vmatpush.xpose.msra.mxu0 0.0
        %463 = vmatpush.xpose.msra.mxu0 0.0
        %464 = vmatpush.xpose.msra.mxu0 0.0
        %465 = vmatpush.xpose.msra.mxu0 0.0
        %466 = vmatpush.xpose.msra.mxu0 0.0
        %467 = vmatpush.xpose.msra.mxu0 0.0
        %468 = vmatpush.xpose.msra.mxu0 0.0
        %469 = vmatpush.xpose.msra.mxu0 0.0
        %470 = vmatpush.xpose.msra.mxu0 0.0
        %471 = vmatpush.xpose.msra.mxu0 0.0
        %472 = vmatpush.xpose.msra.mxu0 %v455
        %473 = vmatmul.f32.gmra.mxu0 %v453
        %v474 = vpop.f32.mrf.mxu0
        %v475 = vadd.f32 0.0, %v474
        %476 = vdwg.mxu0
        %v477 = vmul.f32 %v475, 0.35355338
        %v478 = vsel %vm386, %v477, -inf
        %479 = vmax.xlane.f32.xlu0 %v478
        %v480 = vpop.xlane.xlu0 %479
        %v481 = vsub.f32 %v477, %v480
        %v482 = vmul.f32 %v481, 1.442695
        %v483 = vpow.pop %v482
        %v484 = vsel %vm386, %v483, 0.0
        %485 = vadd.xlane.f32.xlu0 %v484
        %v486 = vpop.xlane.xlu0 %485
        %v487 = vrcp.pop %v486
        %v488 = vmul.f32 %v483, %v487
        %489 = vrot.lane.b32.xlu0 %v381, 56
        %v490 = vpop.permute.xlu0 %489
        %v493 = vsel %vm386, %v488, 0
        %495 = vmatpush.msra.mxu0 0.0
        %496 = vmatpush.msra.mxu0 0.0
        %497 = vmatpush.msra.mxu0 0.0
        %498 = vmatpush.msra.mxu0 0.0
        %499 = vmatpush.msra.mxu0 0.0
        %500 = vmatpush.msra.mxu0 0.0
        %501 = vmatpush.msra.mxu0 0.0
        %502 = vmatpush.msra.mxu0 0.0
        %503 = vmatpush.msra.mxu0 0.0
        %504 = vmatpush.msra.mxu0 0.0
        %505 = vmatpush.msra.mxu0 0.0
        %506 = vmatpush.msra.mxu0 0.0
        %507 = vmatpush.msra.mxu0 0.0
        %508 = vmatpush.msra.mxu0 0.0
        %509 = vmatpush.msra.mxu0 0.0
        %510 = vmatpush.msra.mxu0 %v490
        %511 = vmatmul.f32.gmra.mxu0 %v493
        %v512 = vpop.f32.mrf.mxu0
        %v513 = vadd.f32 0.0, %v512
        %514 = vdwg.mxu0
        %515 = vrot.lane.b32.xlu0 %v381, 112
        %v516 = vpop.permute.xlu0 %515
        %517 = vrot.lane.b32.xlu0 %v381, 80
        %v518 = vpop.permute.xlu0 %517
        %v519 = vsel %vm386, %v516, 0
        %v521 = vsel %vm386, %v518, 0
        %523 = vmatpush.xpose.msra.mxu0 0.0
        %524 = vmatpush.xpose.msra.mxu0 0.0
        %525 = vmatpush.xpose.msra.mxu0 0.0
        %526 = vmatpush.xpose.msra.mxu0 0.0
        %527 = vmatpush.xpose.msra.mxu0 0.0
        %528 = vmatpush.xpose.msra.mxu0 0.0
        %529 = vmatpush.xpose.msra.mxu0 0.0
        %530 = vmatpush.xpose.msra.mxu0 0.0
        %531 = vmatpush.xpose.msra.mxu0 0.0
        %532 = vmatpush.xpose.msra.mxu0 0.0
        %533 = vmatpush.xpose.msra.mxu0 0.0
        %534 = vmatpush.xpose.msra.mxu0 0.0
        %535 = vmatpush.xpose.msra.mxu0 0.0
        %536 = vmatpush.xpose.msra.mxu0 0.0
        %537 = vmatpush.xpose.msra.mxu0 0.0
        %538 = vmatpush.xpose.msra.mxu0 %v521
        %539 = vmatmul.f32.gmra.mxu0 %v519
        %v540 = vpop.f32.mrf.mxu0
        %v541 = vadd.f32 0.0, %v540
        %542 = vdwg.mxu0
        %v543 = vmul.f32 %v541, 0.35355338
        %v544 = vsel %vm386, %v543, -inf
        %545 = vmax.xlane.f32.xlu0 %v544
        %v546 = vpop.xlane.xlu0 %545
        %v547 = vsub.f32 %v543, %v546
        %v548 = vmul.f32 %v547, 1.442695
        %v549 = vpow.pop %v548
        %v550 = vsel %vm386, %v549, 0.0
        %551 = vadd.xlane.f32.xlu0 %v550
        %v552 = vpop.xlane.xlu0 %551
        %v553 = vrcp.pop %v552
        %v554 = vmul.f32 %v549, %v553
        %555 = vrot.lane.b32.xlu0 %v381, 48
        %v556 = vpop.permute.xlu0 %555
        %v559 = vsel %vm386, %v554, 0
        %561 = vmatpush.msra.mxu0 0.0
        %562 = vmatpush.msra.mxu0 0.0
        %563 = vmatpush.msra.mxu0 0.0
        %564 = vmatpush.msra.mxu0 0.0
        %565 = vmatpush.msra.mxu0 0.0
        %566 = vmatpush.msra.mxu0 0.0
        %567 = vmatpush.msra.mxu0 0.0
        %568 = vmatpush.msra.mxu0 0.0
        %569 = vmatpush.msra.mxu0 0.0
        %570 = vmatpush.msra.mxu0 0.0
        %571 = vmatpush.msra.mxu0 0.0
        %572 = vmatpush.msra.mxu0 0.0
        %573 = vmatpush.msra.mxu0 0.0
        %574 = vmatpush.msra.mxu0 0.0
        %575 = vmatpush.msra.mxu0 0.0
        %576 = vmatpush.msra.mxu0 %v556
        %577 = vmatmul.f32.gmra.mxu0 %v559
        %v578 = vpop.f32.mrf.mxu0
        %v579 = vadd.f32 0.0, %v578
        %580 = vdwg.mxu0
        %581 = vrot.lane.b32.xlu0 %v381, 104
        %v582 = vpop.permute.xlu0 %581
        %583 = vrot.lane.b32.xlu0 %v381, 72
        %v584 = vpop.permute.xlu0 %583
        %v585 = vsel %vm386, %v582, 0
        %v587 = vsel %vm386, %v584, 0
        %589 = vmatpush.xpose.msra.mxu0 0.0
        %590 = vmatpush.xpose.msra.mxu0 0.0
        %591 = vmatpush.xpose.msra.mxu0 0.0
        %592 = vmatpush.xpose.msra.mxu0 0.0
        %593 = vmatpush.xpose.msra.mxu0 0.0
        %594 = vmatpush.xpose.msra.mxu0 0.0
        %595 = vmatpush.xpose.msra.mxu0 0.0
        %596 = vmatpush.xpose.msra.mxu0 0.0
        %597 = vmatpush.xpose.msra.mxu0 0.0
        %598 = vmatpush.xpose.msra.mxu0 0.0
        %599 = vmatpush.xpose.msra.mxu0 0.0
        %600 = vmatpush.xpose.msra.mxu0 0.0
        %601 = vmatpush.xpose.msra.mxu0 0.0
        %602 = vmatpush.xpose.msra.mxu0 0.0
        %603 = vmatpush.xpose.msra.mxu0 0.0
        %604 = vmatpush.xpose.msra.mxu0 %v587
        %605 = vmatmul.f32.gmra.mxu0 %v585
        %v606 = vpop.f32.mrf.mxu0
        %v607 = vadd.f32 0.0, %v606
        %608 = vdwg.mxu0
        %v609 = vmul.f32 %v607, 0.35355338
        %v610 = vsel %vm386, %v609, -inf
        %611 = vmax.xlane.f32.xlu0 %v610
        %v612 = vpop.xlane.xlu0 %611
        %v613 = vsub.f32 %v609, %v612
        %v614 = vmul.f32 %v613, 1.442695
        %v615 = vpow.pop %v614
        %v616 = vsel %vm386, %v615, 0.0
        %617 = vadd.xlane.f32.xlu0 %v616
        %v618 = vpop.xlane.xlu0 %617
        %v619 = vrcp.pop %v618
        %v620 = vmul.f32 %v615, %v619
        %621 = vrot.lane.b32.xlu0 %v381, 40
        %v622 = vpop.permute.xlu0 %621
        %v625 = vsel %vm386, %v620, 0
        %627 = vmatpush.msra.mxu0 0.0
        %628 = vmatpush.msra.mxu0 0.0
        %629 = vmatpush.msra.mxu0 0.0
        %630 = vmatpush.msra.mxu0 0.0
        %631 = vmatpush.msra.mxu0 0.0
        %632 = vmatpush.msra.mxu0 0.0
        %633 = vmatpush.msra.mxu0 0.0
        %634 = vmatpush.msra.mxu0 0.0
        %635 = vmatpush.msra.mxu0 0.0
        %636 = vmatpush.msra.mxu0 0.0
        %637 = vmatpush.msra.mxu0 0.0
        %638 = vmatpush.msra.mxu0 0.0
        %639 = vmatpush.msra.mxu0 0.0
        %640 = vmatpush.msra.mxu0 0.0
        %641 = vmatpush.msra.mxu0 0.0
        %642 = vmatpush.msra.mxu0 %v622
        %643 = vmatmul.f32.gmra.mxu0 %v625
        %v644 = vpop.f32.mrf.mxu0
        %v645 = vadd.f32 0.0, %v644
        %646 = vdwg.mxu0
        %648 = vrot.lane.b32.xlu0 %v513, 8
        %v649 = vpop.permute.xlu0 %648
        %652 = vrot.lane.b32.xlu0 %v579, 16
        %v653 = vpop.permute.xlu0 %652
        %656 = vrot.lane.b32.xlu0 %v645, 24
        %v657 = vpop.permute.xlu0 %656
        %v659 = vsel %vm386, %v447, %v649
        %vm660 = vcmask 130048
        %v661 = vsel %vm660, %v659, %v653
        %vm662 = vcmask 195584
        %v663 = vsel %vm662, %v661, %v657
        %v664 = vld [vmem:[%s3] sm:$0xff]
        %v665 = vld [vmem:[%s3 + $0x8] sm:$0xff]
        %v666 = vld [vmem:[%s3 + $0x10] sm:$0xff]
        %v667 = vld [vmem:[%s3 + $0x18] sm:$0xff]
        %v668 = vld [vmem:[%s4] sm:$0x1]
        %v670 = vperm.slane %v668, 0
        %v673 = vsel %vm359, %v663, 0
        %675 = vmatpush.msra.mxu0 0.0
        %676 = vmatpush.msra.mxu0 0.0
        %677 = vmatpush.msra.mxu0 0.0
        %678 = vmatpush.msra.mxu0 0.0
        %679 = vmatpush.msra.mxu0 0.0
        %680 = vmatpush.msra.mxu0 0.0
        %681 = vmatpush.msra.mxu0 0.0
        %682 = vmatpush.msra.mxu0 0.0
        %683 = vmatpush.msra.mxu0 0.0
        %684 = vmatpush.msra.mxu0 0.0
        %685 = vmatpush.msra.mxu0 0.0
        %686 = vmatpush.msra.mxu0 0.0
        %687 = vmatpush.msra.mxu0 %v667
        %688 = vmatpush.msra.mxu0 %v666
        %689 = vmatpush.msra.mxu0 %v665
        %690 = vmatpush.msra.mxu0 %v664
        %691 = vmatmul.f32.gmra.mxu0 %v673
        %v692 = vpop.f32.mrf.mxu0
        %v693 = vadd.f32 %v670, %v692
        %694 = vdwg.mxu0
        %v695 = vadd.f32 %v350, %v693
        %v696 = vld [vmem:[%s5] sm:$0xff]
        %v697 = vld [vmem:[%s5 + $0x8] sm:$0xff]
        %v698 = vld [vmem:[%s5 + $0x10] sm:$0xff]
        %v699 = vld [vmem:[%s5 + $0x18] sm:$0xff]
        %v700 = vld [vmem:[%s6] sm:$0x1]
        %v702 = vperm.slane %v700, 0
        %v705 = vsel %vm359, %v695, 0
        %707 = vmatpush.msra.mxu0 0.0
        %708 = vmatpush.msra.mxu0 0.0
        %709 = vmatpush.msra.mxu0 0.0
        %710 = vmatpush.msra.mxu0 0.0
        %711 = vmatpush.msra.mxu0 0.0
        %712 = vmatpush.msra.mxu0 0.0
        %713 = vmatpush.msra.mxu0 0.0
        %714 = vmatpush.msra.mxu0 0.0
        %715 = vmatpush.msra.mxu0 0.0
        %716 = vmatpush.msra.mxu0 0.0
        %717 = vmatpush.msra.mxu0 0.0
        %718 = vmatpush.msra.mxu0 0.0
        %719 = vmatpush.msra.mxu0 %v699
        %720 = vmatpush.msra.mxu0 %v698
        %721 = vmatpush.msra.mxu0 %v697
        %722 = vmatpush.msra.mxu0 %v696
        %723 = vmatmul.f32.gmra.mxu0 %v705
        %v724 = vpop.f32.mrf.mxu0
        %v725 = vadd.f32 %v702, %v724
        %726 = vdwg.mxu0
        %v727 = vmax.f32 %v725, 0.0
        %v728 = vld [vmem:[%s7] sm:$0xff]
        %v729 = vld [vmem:[%s7 + $0x8] sm:$0xff]
        %v730 = vld [vmem:[%s7 + $0x10] sm:$0xff]
        %v731 = vld [vmem:[%s7 + $0x18] sm:$0xff]
        %v732 = vld [vmem:[%s7 + $0x20] sm:$0xff]
        %v733 = vld [vmem:[%s7 + $0x28] sm:$0xff]
        %v734 = vld [vmem:[%s7 + $0x30] sm:$0xff]
        %v735 = vld [vmem:[%s7 + $0x38] sm:$0xff]
        %v736 = vld [vmem:[%s8] sm:$0x1]
        %v738 = vperm.slane %v736, 0
        %vm740 = vcmask 523264
        %v742 = vsel %vm740, %v727, 0
        %744 = vmatpush.msra.mxu0 0.0
        %745 = vmatpush.msra.mxu0 0.0
        %746 = vmatpush.msra.mxu0 0.0
        %747 = vmatpush.msra.mxu0 0.0
        %748 = vmatpush.msra.mxu0 0.0
        %749 = vmatpush.msra.mxu0 0.0
        %750 = vmatpush.msra.mxu0 0.0
        %751 = vmatpush.msra.mxu0 0.0
        %752 = vmatpush.msra.mxu0 %v735
        %753 = vmatpush.msra.mxu0 %v734
        %754 = vmatpush.msra.mxu0 %v733
        %755 = vmatpush.msra.mxu0 %v732
        %756 = vmatpush.msra.mxu0 %v731
        %757 = vmatpush.msra.mxu0 %v730
        %758 = vmatpush.msra.mxu0 %v729
        %759 = vmatpush.msra.mxu0 %v728
        %760 = vmatmul.f32.gmra.mxu0 %v742
        %v761 = vpop.f32.mrf.mxu0
        %v762 = vadd.f32 %v738, %v761
        %763 = vdwg.mxu0
        %v764 = vadd.f32 %v695, %v762
        %765 = vst.msk [vmem:[%s349] sm:$0xff] %vm359, %v764
        %s766 = sand.u32 %s228, 1
        %s767 = scalar_lea.sflag [#allocation4], %s766
        %s768 = sand.u32 %s228, 1
        %s769 = smul.addr %s768, 8
        %s770 = scalar_lea.vmem [#allocation5], %s769
        // Predicated region
        $region61: #{tpu_custom_call.1} parent=55 // pred_check
          %p771 = pneg %p238
        $region62: #{tpu_custom_call.1} parent=55 // pred_check_branch
          %773 = sbr.rel (%p771) target = $region64
        $region63: #{tpu_custom_call.1} parent=55 // pred_region
          %775 = vsyncadd %s767, 0
          %s776 = smul.addr %s26, 8
          %s777 = scalar_lea.hbm %s9, %s776
          %s779 = sshll.u32 %s770, 4
          %s780 = int_to_ptr.vmem [resolvable:$true] %s779
          %s781 = sshll.u32 %s777, 4
          %s782 = int_to_ptr.hbm [resolvable:$true] %s781
          %784 = dma.vmem_to_hbm [thread:$0]  %s780, 128, %s782, %s767
        $region64: #{tpu_custom_call.1} parent=55 // pred_fallthru
          _
      $region56: #{tpu_custom_call.1} parent=5 // pred_fallthru
        _
      %p785 = scmp.le.s32.totalorder 2, %s21
      // Predicated region
      $region65: #{tpu_custom_call.1} parent=5 // pred_check
        %p786 = pneg %p785
      $region66: #{tpu_custom_call.1} parent=5 // pred_check_branch
        %788 = sbr.rel (%p786) target = $region68
      $region67: #{tpu_custom_call.1} parent=5 // pred_region
        %s789 = ssub.s32 %s21, 2
        // Predicated region
        $region69: #{tpu_custom_call.1} parent=67 // pred_check
          %p790 = pneg %p244
        $region70: #{tpu_custom_call.1} parent=67 // pred_check_branch
          %792 = sbr.rel (%p790) target = $region72
        $region71: #{tpu_custom_call.1} parent=67 // pred_region
          %s793 = sand.u32 %s229, 1
          %s794 = scalar_lea.sflag [#allocation4], %s793
          %s795 = sand.u32 %s229, 1
          %s796 = smul.addr %s795, 8
          %s797 = scalar_lea.vmem [#allocation5], %s796
          %799 = dma.done %s794, 128
        $region72: #{tpu_custom_call.1} parent=67 // pred_fallthru
          _
      $region68: #{tpu_custom_call.1} parent=5 // pred_fallthru
        _
    $region6: #{tpu_custom_call.1} parent=1 // loop_footer
      %s25 = sadd.s32 1, %s21
    $region7: #{tpu_custom_call.1} parent=1 // loop_footer_branch
      %20 = sbr.rel target = $region3
    $region8: #{tpu_custom_call.1} parent=1 // loop_exit
      _
    %800 = vsyncpa [#allocation3], 1
    %s801 = scalar_lea.sflag [#allocation3], 1
    %802 = vsyncpa %s801, 1
    %803 = vsyncpa [#allocation4], 1
    %s804 = scalar_lea.sflag [#allocation4], 1
    %805 = vsyncpa %s804, 1

</llo_original>
